<compile_context>
chip_gen: v7x
topology: tpu7x:2x2x1
jax: 0.10.0
libtpu: 0.0.40
codegen_flags: <defaults>
</compile_context>

<pallas_src>
import functools

import jax
import jax.numpy as jnp
from jax.experimental import pallas as pl
from jax.experimental.pallas import tpu as pltpu

# ---- dimension helpers (PI-GNN convention: d0 = sqrt(N), hidden = d0/2) ----
def INPUT_DIM(N):
    return max(2, int(round(N ** 0.5)))

def HIDDEN_DIM(N):
    return max(2, INPUT_DIM(N) // 2)

OUTPUT_DIM = 1
LANE = 128


def _round_up(x, m):
    return ((x + m - 1) // m) * m


def _pick_tm(n):
    """Largest row tile <= 512 that divides N (multiple of 16 for bf16 sublane
    packing); otherwise fall back to a single full-height tile."""
    for tm in (512, 256, 128, 64, 32, 16):
        if n % tm == 0:
            return tm
    return n


def _vmem_limit_bytes(tm, n, dpad):
    need = (2 * tm * n * 2        # bf16 A row tile, double-buffered
            + 2 * n * dpad * 2    # bf16 projection (grid-invariant block)
            + 2 * dpad * 4        # f32 bias row
            + 2 * tm * dpad * 4)  # f32 output tile, double-buffered
    # 2x headroom for compiler scratch, capped below v7x's 64 MiB physical VMEM.
    return int(min(max(2 * need, 8 << 20), 48 << 20))


# --------------------------- Pallas kernel ----------------------------------
def _ahat_spmm_kernel(a_ref, p_ref, b_ref, o_ref, *, activation):
    """out_tile = activation(A_tile @ P + b).

    a_ref: (TM, N)    bf16  row tile of the normalized adjacency (streamed)
    p_ref: (N, DPAD)  bf16  precomputed projection X@W (lane-dense, resident)
    b_ref: (1, DPAD)  f32   bias row
    o_ref: (TM, DPAD) f32   lane-dense output tile
    """
    acc = jnp.dot(a_ref[...], p_ref[...], preferred_element_type=jnp.float32)
    acc = acc + b_ref[...]
    if activation == "relu":
        o_ref[...] = jnp.maximum(acc, 0.0)
    else:  # "sigmoid"
        o_ref[...] = jax.nn.sigmoid(acc)


def _ahat_spmm(a_hat_bf16, p_bf16, b_f32, *, tm, activation):
    """One GCN aggregation: activation(A_hat @ P + b), row-tiled over A_hat."""
    n = a_hat_bf16.shape[0]
    dpad = p_bf16.shape[1]
    cost = pl.CostEstimate(
        flops=2 * n * n * dpad,
        transcendentals=(n * dpad) if activation == "sigmoid" else 0,
        bytes_accessed=n * n * 2 + n * dpad * 2 + dpad * 4 + n * dpad * 4,
    )
    return pl.pallas_call(
        functools.partial(_ahat_spmm_kernel, activation=activation),
        out_shape=jax.ShapeDtypeStruct((n, dpad), jnp.float32),
        grid=(n // tm,),
        in_specs=[
            pl.BlockSpec((tm, n), lambda i: (i, 0)),     # stream A row tiles
            pl.BlockSpec((n, dpad), lambda i: (0, 0)),   # projection, resident
            pl.BlockSpec((1, dpad), lambda i: (0, 0)),   # bias, resident
        ],
        out_specs=pl.BlockSpec((tm, dpad), lambda i: (i, 0)),
        compiler_params=pltpu.CompilerParams(
            dimension_semantics=("parallel",),
            vmem_limit_bytes=_vmem_limit_bytes(tm, n, dpad),
        ),
        cost_estimate=cost,
    )(a_hat_bf16, p_bf16, b_f32)


# --------------------------- JAX glue ----------------------------------------
def _build_a_hat(edge_index, edge_attr, N):
    """A_hat = D^-1/2 (A + remaining self loops) D^-1/2 (PyG gcn_norm)."""
    src, dst = edge_index[0], edge_index[1]
    w = edge_attr.astype(jnp.float32)
    a = jnp.zeros((N, N), jnp.float32).at[dst, src].add(w)  # message src -> dst
    # add_remaining_self_loops: weight-1 self loops only for nodes without one.
    self_cnt = jnp.zeros((N,), jnp.float32).at[dst].add(
        jnp.where(src == dst, 1.0, 0.0))
    a = a + jnp.diag(jnp.where(self_cnt > 0.0, 0.0, 1.0))
    deg = a.sum(axis=1)
    dinv = jnp.where(deg > 0, jax.lax.rsqrt(deg), 0.0)
    return dinv[:, None] * a * dinv[None, :]


@functools.partial(jax.jit, static_argnames=("N",))
def pubo_forward(edge_index, edge_attr, x0, w1, b1, w2, b2, *, N):
    """Dense-adjacency 2-layer GCN forward. Returns flattened sigmoid outputs."""
    din, dh = w1.shape
    dpad = _round_up(max(dh, LANE), LANE)          # lane-dense hidden width
    opad = _round_up(max(OUTPUT_DIM, LANE), LANE)  # lane-dense output width
    tm = _pick_tm(N)

    # ---- glue: normalized adjacency, cast to bf16 for the bandwidth-bound stream
    a_hat = _build_a_hat(edge_index, edge_attr, N).astype(jnp.bfloat16)

    # ---- zero-pad params to lane width (padding keeps the math exact) ----
    w1p = jnp.zeros((din, dpad), jnp.float32).at[:, :dh].set(w1)
    b1p = jnp.zeros((1, dpad), jnp.float32).at[:, :dh].set(b1.reshape(1, -1))
    w2p = jnp.zeros((dpad, opad), jnp.float32).at[:dh, :OUTPUT_DIM].set(w2)
    b2p = jnp.zeros((1, opad), jnp.float32).at[:, :OUTPUT_DIM].set(b2.reshape(1, -1))

    # ---- layer 1: relu(A_hat @ (X @ W1) + b1) ----
    xw1 = (x0 @ w1p).astype(jnp.bfloat16)                         # tiny: O(N*din*dh)
    h = _ahat_spmm(a_hat, xw1, b1p, tm=tm, activation="relu")     # (N, dpad) f32
    # padded columns of h are exactly 0 (relu(0 + 0)).

    # ---- layer 2: sigmoid(A_hat @ (H @ W2) + b2) ----
    hw2 = (h @ w2p).astype(jnp.bfloat16)                          # tiny: O(N*dh)
    y = _ahat_spmm(a_hat, hw2, b2p, tm=tm, activation="sigmoid")  # (N, opad) f32

    return y[:, :OUTPUT_DIM].reshape(-1)


def pubo_forward_reference(edge_index, edge_attr, x0, w1, b1, w2, b2, N):
    """Pure-JAX f32 reference for correctness checking."""
    a_hat = _build_a_hat(edge_index, edge_attr, N)
    h = jnp.maximum(a_hat @ (x0 @ w1) + b1.reshape(1, -1), 0.0)
    y = jax.nn.sigmoid(a_hat @ (h @ w2) + b2.reshape(1, -1))
    return y.reshape(-1)


# --------------------------- wrapper / params --------------------------------
def make_params(key, N):
    din, dh = INPUT_DIM(N), HIDDEN_DIM(N)
    k_emb, k1, k2 = jax.random.split(key, 3)
    # __init_embedding(): torch.randn(N, INPUT_DIM(N)) -- deterministic here.
    x0 = jax.random.normal(k_emb, (N, din), jnp.float32)
    # GCNConv weights (glorot-style scale) and biases (zeros, like PyG init).
    w1 = jax.random.normal(k1, (din, dh), jnp.float32) * (2.0 / (din + dh)) ** 0.5
    b1 = jnp.zeros((1, dh), jnp.float32)
    w2 = jax.random.normal(k2, (dh, OUTPUT_DIM), jnp.float32) * (2.0 / (dh + OUTPUT_DIM)) ** 0.5
    b2 = jnp.zeros((1, OUTPUT_DIM), jnp.float32)
    return x0, w1, b1, w2, b2


if __name__ == "__main__":
    N = 64  # number of PUBO variables / graph nodes
    key = jax.random.PRNGKey(0)

    # Deterministic small graph: undirected ring + a few chords.
    ring_src = jnp.arange(N, dtype=jnp.int32)
    ring_dst = (ring_src + 1) % N
    chord_src = jnp.arange(0, N, 4, dtype=jnp.int32)
    chord_dst = (chord_src + N // 2) % N
    src = jnp.concatenate([ring_src, ring_dst, chord_src, chord_dst])
    dst = jnp.concatenate([ring_dst, ring_src, chord_dst, chord_src])
    edge_index = jnp.stack([src, dst], axis=0)                    # (2, E)
    edge_attr = 0.5 + jax.random.uniform(jax.random.PRNGKey(1),
                                         (edge_index.shape[1],), jnp.float32)

    x0, w1, b1, w2, b2 = make_params(key, N)

    out = pubo_forward(edge_index, edge_attr, x0, w1, b1, w2, b2, N=N)
    out = jax.block_until_ready(out)

    ref = pubo_forward_reference(edge_index, edge_attr, x0, w1, b1, w2, b2, N)

    assert out.shape == (N * OUTPUT_DIM,)
    assert bool(jnp.all(jnp.isfinite(out)))
    assert bool(jnp.all((out >= 0.0) & (out <= 1.0)))
    err = float(jnp.max(jnp.abs(out - ref)))
    assert err < 5e-2, f"max abs diff vs f32 reference: {err}"
    print("KERNEL_OK")
</pallas_src>

<mosaic_0001>
module attributes {stable_mosaic.version = 11 : i64} {
  func.func private @main(%arg0: i32) attributes {dimension_semantics = [#tpu.dimension_semantics<core_parallel>], iteration_bounds = array<i64: 2>, tpu.core_type = #tpu.core_type<sc_scalar_subcore>, window_params = []} {
    return
  }
}

module attributes {stable_mosaic.version = 11 : i64} {
  func.func private @main(%arg0: i32) attributes {dimension_semantics = [#tpu.dimension_semantics<core_parallel>], iteration_bounds = array<i64: 2>, tpu.core_type = #tpu.core_type<sc_scalar_subcore>, window_params = []} {
    return
  }
}

module attributes {stable_mosaic.version = 11 : i64} {
  func.func @_ahat_spmm_kernel(%arg0: i32, %arg1: memref<64x64xbf16, #tpu.memory_space<vmem>>, %arg2: memref<64x128xbf16, #tpu.memory_space<vmem>>, %arg3: memref<1x128xf32, #tpu.memory_space<vmem>>, %arg4: memref<64x128xf32, #tpu.memory_space<vmem>>) attributes {dimension_semantics = [#tpu.dimension_semantics<parallel>], iteration_bounds = array<i64: 1>, scalar_prefetch = 0 : i64, scratch_operands = 0 : i64, tpu.core_type = #tpu.core_type<tc>, window_params = [{transform_indices = @transform_0, window_bounds = array<i64: 64, 64>}, {pipeline_mode = #tpu.pipeline_mode<synchronous>, transform_indices = @transform_1, window_bounds = array<i64: 64, 128>}, {pipeline_mode = #tpu.pipeline_mode<synchronous>, transform_indices = @transform_2, window_bounds = array<i64: 1, 128>}, {transform_indices = @transform_3, window_bounds = array<i64: 64, 128>}]} {
    %c0 = arith.constant 0 : index
    %c0_0 = arith.constant 0 : index
    %0 = vector.load %arg1[%c0, %c0_0] : memref<64x64xbf16, #tpu.memory_space<vmem>>, vector<64x64xbf16>
    %c0_1 = arith.constant 0 : index
    %c0_2 = arith.constant 0 : index
    %1 = vector.load %arg2[%c0_1, %c0_2] : memref<64x128xbf16, #tpu.memory_space<vmem>>, vector<64x128xbf16>
    %cst = arith.constant dense<0.000000e+00> : vector<64x128xf32>
    %2 = tpu.matmul %0, %1, %cst {dimension_numbers = #tpu.dot_dimension_numbers<[1], [0], [0], [1], [0, 0, 1, 1], [], []>} : vector<64x64xbf16>, vector<64x128xbf16>, vector<64x128xf32> -> vector<64x128xf32>
    %c0_3 = arith.constant 0 : index
    %c0_4 = arith.constant 0 : index
    %3 = vector.load %arg3[%c0_3, %c0_4] : memref<1x128xf32, #tpu.memory_space<vmem>>, vector<1x128xf32>
    %4 = vector.broadcast %3 : vector<1x128xf32> to vector<64x128xf32>
    %5 = arith.addf %2, %4 : vector<64x128xf32>
    %cst_5 = arith.constant 0.000000e+00 : f32
    %6 = vector.broadcast %cst_5 : f32 to vector<64x128xf32>
    %7 = arith.maximumf %5, %6 : vector<64x128xf32>
    %c0_6 = arith.constant 0 : index
    %c0_7 = arith.constant 0 : index
    %8 = vector.load %arg4[%c0_6, %c0_7] : memref<64x128xf32, #tpu.memory_space<vmem>>, vector<64x128xf32>
    tpu.vector_store %arg4[%c0_6, %c0_7], %7 {strides = array<i32>} : memref<64x128xf32, #tpu.memory_space<vmem>>, vector<64x128xf32>,
    return
  }
  func.func @transform_0(%arg0: i32) -> (i32, i32) {
    %c0_i32 = arith.constant 0 : i32
    %c0_i32_0 = arith.constant 0 : i32
    return %arg0, %c0_i32 : i32, i32
  }
  func.func @transform_1(%arg0: i32) -> (i32, i32) {
    %c0_i32 = arith.constant 0 : i32
    %c0_i32_0 = arith.constant 0 : i32
    %c0_i32_1 = arith.constant 0 : i32
    return %c0_i32, %c0_i32_0 : i32, i32
  }
  func.func @transform_2(%arg0: i32) -> (i32, i32) {
    %c0_i32 = arith.constant 0 : i32
    %c0_i32_0 = arith.constant 0 : i32
    %c0_i32_1 = arith.constant 0 : i32
    return %c0_i32, %c0_i32_0 : i32, i32
  }
  func.func @transform_3(%arg0: i32) -> (i32, i32) {
    %c0_i32 = arith.constant 0 : i32
    %c0_i32_0 = arith.constant 0 : i32
    return %arg0, %c0_i32 : i32, i32
  }
}

module attributes {stable_mosaic.version = 11 : i64} {
  func.func @_ahat_spmm_kernel(%arg0: i32, %arg1: memref<64x64xbf16, #tpu.memory_space<vmem>>, %arg2: memref<64x128xbf16, #tpu.memory_space<vmem>>, %arg3: memref<1x128xf32, #tpu.memory_space<vmem>>, %arg4: memref<64x128xf32, #tpu.memory_space<vmem>>) attributes {dimension_semantics = [#tpu.dimension_semantics<parallel>], iteration_bounds = array<i64: 1>, scalar_prefetch = 0 : i64, scratch_operands = 0 : i64, tpu.core_type = #tpu.core_type<tc>, window_params = [{transform_indices = @transform_0, window_bounds = array<i64: 64, 64>}, {pipeline_mode = #tpu.pipeline_mode<synchronous>, transform_indices = @transform_1, window_bounds = array<i64: 64, 128>}, {pipeline_mode = #tpu.pipeline_mode<synchronous>, transform_indices = @transform_2, window_bounds = array<i64: 1, 128>}, {transform_indices = @transform_3, window_bounds = array<i64: 64, 128>}]} {
    %c0 = arith.constant 0 : index
    %c0_0 = arith.constant 0 : index
    %0 = vector.load %arg1[%c0, %c0_0] : memref<64x64xbf16, #tpu.memory_space<vmem>>, vector<64x64xbf16>
    %c0_1 = arith.constant 0 : index
    %c0_2 = arith.constant 0 : index
    %1 = vector.load %arg2[%c0_1, %c0_2] : memref<64x128xbf16, #tpu.memory_space<vmem>>, vector<64x128xbf16>
    %cst = arith.constant dense<0.000000e+00> : vector<64x128xf32>
    %2 = tpu.matmul %0, %1, %cst {dimension_numbers = #tpu.dot_dimension_numbers<[1], [0], [0], [1], [0, 0, 1, 1], [], []>} : vector<64x64xbf16>, vector<64x128xbf16>, vector<64x128xf32> -> vector<64x128xf32>
    %c0_3 = arith.constant 0 : index
    %c0_4 = arith.constant 0 : index
    %3 = vector.load %arg3[%c0_3, %c0_4] : memref<1x128xf32, #tpu.memory_space<vmem>>, vector<1x128xf32>
    %4 = vector.broadcast %3 : vector<1x128xf32> to vector<64x128xf32>
    %5 = arith.addf %2, %4 : vector<64x128xf32>
    %6 = arith.negf %5 : vector<64x128xf32>
    %7 = math.exp %6 : vector<64x128xf32>
    %cst_5 = arith.constant 1.000000e+00 : f32
    %8 = vector.broadcast %cst_5 : f32 to vector<64x128xf32>
    %9 = arith.addf %8, %7 : vector<64x128xf32>
    %10 = arith.divf %8, %9 : vector<64x128xf32>
    %c0_6 = arith.constant 0 : index
    %c0_7 = arith.constant 0 : index
    %11 = vector.load %arg4[%c0_6, %c0_7] : memref<64x128xf32, #tpu.memory_space<vmem>>, vector<64x128xf32>
    tpu.vector_store %arg4[%c0_6, %c0_7], %10 {strides = array<i32>} : memref<64x128xf32, #tpu.memory_space<vmem>>, vector<64x128xf32>,
    return
  }
  func.func @transform_0(%arg0: i32) -> (i32, i32) {
    %c0_i32 = arith.constant 0 : i32
    %c0_i32_0 = arith.constant 0 : i32
    return %arg0, %c0_i32 : i32, i32
  }
  func.func @transform_1(%arg0: i32) -> (i32, i32) {
    %c0_i32 = arith.constant 0 : i32
    %c0_i32_0 = arith.constant 0 : i32
    %c0_i32_1 = arith.constant 0 : i32
    return %c0_i32, %c0_i32_0 : i32, i32
  }
  func.func @transform_2(%arg0: i32) -> (i32, i32) {
    %c0_i32 = arith.constant 0 : i32
    %c0_i32_0 = arith.constant 0 : i32
    %c0_i32_1 = arith.constant 0 : i32
    return %c0_i32, %c0_i32_0 : i32, i32
  }
  func.func @transform_3(%arg0: i32) -> (i32, i32) {
    %c0_i32 = arith.constant 0 : i32
    %c0_i32_0 = arith.constant 0 : i32
    return %arg0, %c0_i32 : i32, i32
  }
}

</mosaic_0001>

<llo_original>
// kernel: pubo_forward.2
$region0: #{pubo_forward.2}
  #allocation0 [shape = 'u32[]', space=smem, size = 0x4, offset = 0x4, fixed_abs, tag = 'smem constant byte address 0x4 - core index']
  #allocation1 [shape = 'u32[144,128]{1,0:T(1,128)}', space=vmem, size = 0x12000, scoped, tag = 'internal scratch']
  %s0 = inlined_call_operand.vmem [shape: bf16[64,64], index: 0, kind: input, shape index: {}]
  %s1 = inlined_call_operand.vmem [shape: bf16[64,128], index: 1, kind: input, shape index: {}]
  %s2 = inlined_call_operand.vmem [shape: f32[1,128], index: 2, kind: input, shape index: {}]
  %s3 = inlined_call_operand.vmem [shape: f32[64,128], index: 3, kind: output, shape index: {}]
  %s4 = sld [smem:[#allocation0]]
  $region22: #{pubo_forward.2} parent=0
    _
  %s6 = ssub.s32 1, %s4
  %s7 = scalar_select 0, %s6, %s4
  // Predicated region
  $region2: #{pubo_forward.2} parent=0 // pred_check
    _
  $region3: #{pubo_forward.2} parent=0 // pred_check_branch
    %9 = sbr.rel (0) target = $region5
  $region4: #{pubo_forward.2} parent=0 // pred_region
    _
  $region5: #{pubo_forward.2} parent=0 // pred_fallthru
    _
  // Predicated region
  $region6: #{pubo_forward.2} parent=0 // pred_check
    _
  $region7: #{pubo_forward.2} parent=0 // pred_check_branch
    %11 = sbr.rel (0) target = $region9
  $region8: #{pubo_forward.2} parent=0 // pred_region
    _
  $region9: #{pubo_forward.2} parent=0 // pred_fallthru
    _
  // Predicated region
  $region10: #{pubo_forward.2} parent=0 // pred_check
    _
  $region11: #{pubo_forward.2} parent=0 // pred_check_branch
    %13 = sbr.rel (0) target = $region13
  $region12: #{pubo_forward.2} parent=0 // pred_region
    _
  $region13: #{pubo_forward.2} parent=0 // pred_fallthru
    _
  %v15 = vld [vmem:[%s0] sm:$0xf]
  %v16 = vld [vmem:[%s0 + $0x4] sm:$0xf]
  %v17 = vld [vmem:[%s0 + $0x8] sm:$0xf]
  %v18 = vld [vmem:[%s0 + $0xc] sm:$0xf]
  %v19 = vld [vmem:[%s0 + $0x10] sm:$0xf]
  %v20 = vld [vmem:[%s0 + $0x14] sm:$0xf]
  %v21 = vld [vmem:[%s0 + $0x18] sm:$0xf]
  %v22 = vld [vmem:[%s0 + $0x1c] sm:$0xf]
  %v23 = vld [vmem:[%s1] sm:$0xf]
  %v24 = vld [vmem:[%s1 + $0x4] sm:$0xf]
  %v25 = vld [vmem:[%s1 + $0x8] sm:$0xf]
  %v26 = vld [vmem:[%s1 + $0xc] sm:$0xf]
  %v27 = vld [vmem:[%s1 + $0x10] sm:$0xf]
  %v28 = vld [vmem:[%s1 + $0x14] sm:$0xf]
  %v29 = vld [vmem:[%s1 + $0x18] sm:$0xf]
  %v30 = vld [vmem:[%s1 + $0x1c] sm:$0xf]
  %v31 = vld [vmem:[%s2] sm:$0x1]
  %v33 = vlaneseq
  %v34 = vshrl.u32 %v33, 7
  %v35 = vsub.s32 0, %v34
  %v36 = vrot.slane %v31, %v35
  %v46 = vunpack.c.l.b16 %v15
  %v47 = vunpack.c.l.b16 %v16
  %v48 = vunpack.c.l.b16 %v17
  %v49 = vunpack.c.l.b16 %v18
  %v50 = vunpack.c.l.b16 %v19
  %v51 = vunpack.c.l.b16 %v20
  %v52 = vunpack.c.l.b16 %v21
  %v53 = vunpack.c.l.b16 %v22
  %v54 = vpack.c.b16 %v47, %v46
  %v55 = vpack.c.b16 %v49, %v48
  %v56 = vpack.c.b16 %v51, %v50
  %v57 = vpack.c.b16 %v53, %v52
  %v66 = vunpack.c.l.b16 %v23
  %v67 = vunpack.c.l.b16 %v24
  %v68 = vunpack.c.l.b16 %v25
  %v69 = vunpack.c.l.b16 %v26
  %v70 = vunpack.c.l.b16 %v27
  %v71 = vunpack.c.l.b16 %v28
  %v72 = vunpack.c.l.b16 %v29
  %v73 = vunpack.c.l.b16 %v30
  %v74 = vpack.c.b16 %v67, %v66
  %v75 = vpack.c.b16 %v69, %v68
  %v76 = vpack.c.b16 %v71, %v70
  %v77 = vpack.c.b16 %v73, %v72
  %vm82 = vcmask 523264
  %v84 = vsel %vm82, %v54, 0
  %v87 = vsel %vm82, %v55, 0
  %v90 = vsel %vm82, %v56, 0
  %v93 = vsel %vm82, %v57, 0
  %95 = vmatprep.subr.bf16.mxu0 0
  %96 = vmatpush1.bf16.msra.mxu0 %v74
  %97 = vmatprep.subr.bf16.mxu0 0
  %98 = vmatpush1.bf16.msra.mxu0 %v75
  %99 = vmatprep.subr.bf16.mxu0 0
  %100 = vmatpush1.bf16.msra.mxu0 %v76
  %101 = vmatprep.subr.bf16.mxu0 0
  %102 = vmatpush1.bf16.msra.mxu0 %v77
  %103 = vmatprep.subr.bf16.mxu0 0
  %104 = vmatpush1.bf16.msra.mxu0 0
  %105 = vmatprep.subr.bf16.mxu0 0
  %106 = vmatpush1.bf16.msra.mxu0 0
  %107 = vmatprep.subr.bf16.mxu0 0
  %108 = vmatpush1.bf16.msra.mxu0 0
  %109 = vmatprep.subr.bf16.mxu0 0
  %110 = vmatpush1.bf16.msra.mxu0 0
  %111 = vmatprep.subr.bf16.mxu0 0
  %112 = vmatpush1.bf16.msra.mxu0 0
  %113 = vmatprep.subr.bf16.mxu0 0
  %114 = vmatpush1.bf16.msra.mxu0 0
  %115 = vmatprep.subr.bf16.mxu0 0
  %116 = vmatpush1.bf16.msra.mxu0 0
  %117 = vmatprep.subr.bf16.mxu0 0
  %118 = vmatpush1.bf16.msra.mxu0 0
  %119 = vmatprep.subr.bf16.mxu0 0
  %120 = vmatpush1.bf16.msra.mxu0 0
  %121 = vmatprep.subr.bf16.mxu0 0
  %122 = vmatpush1.bf16.msra.mxu0 0
  %123 = vmatprep.subr.bf16.mxu0 0
  %124 = vmatpush1.bf16.msra.mxu0 0
  %125 = vmatprep.subr.bf16.mxu0 0
  %126 = vmatpush1.bf16.msra.mxu0 0
  %127 = vmatprep.mubr.bf16.mxu0 0
  %128 = vmatmul.mubr.bf16.gmra.mrb[0].mxu0 %v84
  %v129 = vpop.f32.mrb[0].mxu0
  %v130 = vadd.f32 %v36, %v129
  %v131 = vpop.f32.mrb[0].mxu0
  %v132 = vpop.f32.mrb[0].mxu0
  %v133 = vadd.f32 %v36, %v132
  %v134 = vpop.f32.mrb[0].mxu0
  %135 = vmatprep.mubr.bf16.mxu0 0
  %136 = vmatmul.mubr.bf16.gmra.mrb[0].mxu0 %v87
  %v137 = vpop.f32.mrb[0].mxu0
  %v138 = vadd.f32 %v36, %v137
  %v139 = vpop.f32.mrb[0].mxu0
  %v140 = vpop.f32.mrb[0].mxu0
  %v141 = vadd.f32 %v36, %v140
  %v142 = vpop.f32.mrb[0].mxu0
  %143 = vmatprep.mubr.bf16.mxu0 0
  %144 = vmatmul.mubr.bf16.gmra.mrb[0].mxu0 %v90
  %v145 = vpop.f32.mrb[0].mxu0
  %v146 = vadd.f32 %v36, %v145
  %v147 = vpop.f32.mrb[0].mxu0
  %v148 = vpop.f32.mrb[0].mxu0
  %v149 = vadd.f32 %v36, %v148
  %v150 = vpop.f32.mrb[0].mxu0
  %151 = vmatprep.mubr.bf16.mxu0 0
  %152 = vmatmul.mubr.bf16.gmra.mrb[0].mxu0 %v93
  %v153 = vpop.f32.mrb[0].mxu0
  %v154 = vadd.f32 %v36, %v153
  %v155 = vpop.f32.mrb[0].mxu0
  %v156 = vpop.f32.mrb[0].mxu0
  %v157 = vadd.f32 %v36, %v156
  %v158 = vpop.f32.mrb[0].mxu0
  %159 = vdwg.mxu0
  %v160 = vmax.f32 %v130, 0.0
  %v161 = vmax.f32 %v133, 0.0
  %v162 = vmax.f32 %v138, 0.0
  %v163 = vmax.f32 %v141, 0.0
  %v164 = vmax.f32 %v146, 0.0
  %v165 = vmax.f32 %v149, 0.0
  %v166 = vmax.f32 %v154, 0.0
  %v167 = vmax.f32 %v157, 0.0
  %168 = vst [vmem:[%s3] sm:$0xff] %v160
  %169 = vst [vmem:[%s3 + $0x8] sm:$0xff] %v161
  %170 = vst [vmem:[%s3 + $0x10] sm:$0xff] %v162
  %171 = vst [vmem:[%s3 + $0x18] sm:$0xff] %v163
  %172 = vst [vmem:[%s3 + $0x20] sm:$0xff] %v164
  %173 = vst [vmem:[%s3 + $0x28] sm:$0xff] %v165
  %174 = vst [vmem:[%s3 + $0x30] sm:$0xff] %v166
  %175 = vst [vmem:[%s3 + $0x38] sm:$0xff] %v167
  // Predicated region
  $region14: #{pubo_forward.2} parent=0 // pred_check
    _
  $region15: #{pubo_forward.2} parent=0 // pred_check_branch
    %177 = sbr.rel (0) target = $region17
  $region16: #{pubo_forward.2} parent=0 // pred_region
    _
  $region17: #{pubo_forward.2} parent=0 // pred_fallthru
    _
  // Predicated region
  $region18: #{pubo_forward.2} parent=0 // pred_check
    _
  $region19: #{pubo_forward.2} parent=0 // pred_check_branch
    %179 = sbr.rel (0) target = $region21
  $region20: #{pubo_forward.2} parent=0 // pred_region
    _
  $region21: #{pubo_forward.2} parent=0 // pred_fallthru
    _

// kernel: pubo_forward.3
$region0: #{pubo_forward.3}
  #allocation0 [shape = 'u32[]', space=smem, size = 0x4, offset = 0x4, fixed_abs, tag = 'smem constant byte address 0x4 - core index']
  #allocation1 [shape = 'u32[144,128]{1,0:T(1,128)}', space=vmem, size = 0x12000, scoped, tag = 'internal scratch']
  %s0 = inlined_call_operand.vmem [shape: bf16[64,64], index: 0, kind: input, shape index: {}]
  %s1 = inlined_call_operand.vmem [shape: bf16[64,128], index: 1, kind: input, shape index: {}]
  %s2 = inlined_call_operand.vmem [shape: f32[1,128], index: 2, kind: input, shape index: {}]
  %s3 = inlined_call_operand.vmem [shape: f32[64,128], index: 3, kind: output, shape index: {}]
  %s4 = sld [smem:[#allocation0]]
  $region22: #{pubo_forward.3} parent=0
    _
  %s6 = ssub.s32 1, %s4
  %s7 = scalar_select 0, %s6, %s4
  // Predicated region
  $region2: #{pubo_forward.3} parent=0 // pred_check
    _
  $region3: #{pubo_forward.3} parent=0 // pred_check_branch
    %9 = sbr.rel (0) target = $region5
  $region4: #{pubo_forward.3} parent=0 // pred_region
    _
  $region5: #{pubo_forward.3} parent=0 // pred_fallthru
    _
  // Predicated region
  $region6: #{pubo_forward.3} parent=0 // pred_check
    _
  $region7: #{pubo_forward.3} parent=0 // pred_check_branch
    %11 = sbr.rel (0) target = $region9
  $region8: #{pubo_forward.3} parent=0 // pred_region
    _
  $region9: #{pubo_forward.3} parent=0 // pred_fallthru
    _
  // Predicated region
  $region10: #{pubo_forward.3} parent=0 // pred_check
    _
  $region11: #{pubo_forward.3} parent=0 // pred_check_branch
    %13 = sbr.rel (0) target = $region13
  $region12: #{pubo_forward.3} parent=0 // pred_region
    _
  $region13: #{pubo_forward.3} parent=0 // pred_fallthru
    _
  %v15 = vld [vmem:[%s0] sm:$0xf]
  %v16 = vld [vmem:[%s0 + $0x4] sm:$0xf]
  %v17 = vld [vmem:[%s0 + $0x8] sm:$0xf]
  %v18 = vld [vmem:[%s0 + $0xc] sm:$0xf]
  %v19 = vld [vmem:[%s0 + $0x10] sm:$0xf]
  %v20 = vld [vmem:[%s0 + $0x14] sm:$0xf]
  %v21 = vld [vmem:[%s0 + $0x18] sm:$0xf]
  %v22 = vld [vmem:[%s0 + $0x1c] sm:$0xf]
  %v23 = vld [vmem:[%s1] sm:$0xf]
  %v24 = vld [vmem:[%s1 + $0x4] sm:$0xf]
  %v25 = vld [vmem:[%s1 + $0x8] sm:$0xf]
  %v26 = vld [vmem:[%s1 + $0xc] sm:$0xf]
  %v27 = vld [vmem:[%s1 + $0x10] sm:$0xf]
  %v28 = vld [vmem:[%s1 + $0x14] sm:$0xf]
  %v29 = vld [vmem:[%s1 + $0x18] sm:$0xf]
  %v30 = vld [vmem:[%s1 + $0x1c] sm:$0xf]
  %v31 = vld [vmem:[%s2] sm:$0x1]
  %v33 = vlaneseq
  %v34 = vshrl.u32 %v33, 7
  %v35 = vsub.s32 0, %v34
  %v36 = vrot.slane %v31, %v35
  %v46 = vunpack.c.l.b16 %v15
  %v47 = vunpack.c.l.b16 %v16
  %v48 = vunpack.c.l.b16 %v17
  %v49 = vunpack.c.l.b16 %v18
  %v50 = vunpack.c.l.b16 %v19
  %v51 = vunpack.c.l.b16 %v20
  %v52 = vunpack.c.l.b16 %v21
  %v53 = vunpack.c.l.b16 %v22
  %v54 = vpack.c.b16 %v47, %v46
  %v55 = vpack.c.b16 %v49, %v48
  %v56 = vpack.c.b16 %v51, %v50
  %v57 = vpack.c.b16 %v53, %v52
  %v66 = vunpack.c.l.b16 %v23
  %v67 = vunpack.c.l.b16 %v24
  %v68 = vunpack.c.l.b16 %v25
  %v69 = vunpack.c.l.b16 %v26
  %v70 = vunpack.c.l.b16 %v27
  %v71 = vunpack.c.l.b16 %v28
  %v72 = vunpack.c.l.b16 %v29
  %v73 = vunpack.c.l.b16 %v30
  %v74 = vpack.c.b16 %v67, %v66
  %v75 = vpack.c.b16 %v69, %v68
  %v76 = vpack.c.b16 %v71, %v70
  %v77 = vpack.c.b16 %v73, %v72
  %vm82 = vcmask 523264
  %v84 = vsel %vm82, %v54, 0
  %v87 = vsel %vm82, %v55, 0
  %v90 = vsel %vm82, %v56, 0
  %v93 = vsel %vm82, %v57, 0
  %95 = vmatprep.subr.bf16.mxu0 0
  %96 = vmatpush1.bf16.msra.mxu0 %v74
  %97 = vmatprep.subr.bf16.mxu0 0
  %98 = vmatpush1.bf16.msra.mxu0 %v75
  %99 = vmatprep.subr.bf16.mxu0 0
  %100 = vmatpush1.bf16.msra.mxu0 %v76
  %101 = vmatprep.subr.bf16.mxu0 0
  %102 = vmatpush1.bf16.msra.mxu0 %v77
  %103 = vmatprep.subr.bf16.mxu0 0
  %104 = vmatpush1.bf16.msra.mxu0 0
  %105 = vmatprep.subr.bf16.mxu0 0
  %106 = vmatpush1.bf16.msra.mxu0 0
  %107 = vmatprep.subr.bf16.mxu0 0
  %108 = vmatpush1.bf16.msra.mxu0 0
  %109 = vmatprep.subr.bf16.mxu0 0
  %110 = vmatpush1.bf16.msra.mxu0 0
  %111 = vmatprep.subr.bf16.mxu0 0
  %112 = vmatpush1.bf16.msra.mxu0 0
  %113 = vmatprep.subr.bf16.mxu0 0
  %114 = vmatpush1.bf16.msra.mxu0 0
  %115 = vmatprep.subr.bf16.mxu0 0
  %116 = vmatpush1.bf16.msra.mxu0 0
  %117 = vmatprep.subr.bf16.mxu0 0
  %118 = vmatpush1.bf16.msra.mxu0 0
  %119 = vmatprep.subr.bf16.mxu0 0
  %120 = vmatpush1.bf16.msra.mxu0 0
  %121 = vmatprep.subr.bf16.mxu0 0
  %122 = vmatpush1.bf16.msra.mxu0 0
  %123 = vmatprep.subr.bf16.mxu0 0
  %124 = vmatpush1.bf16.msra.mxu0 0
  %125 = vmatprep.subr.bf16.mxu0 0
  %126 = vmatpush1.bf16.msra.mxu0 0
  %127 = vmatprep.mubr.bf16.mxu0 0
  %128 = vmatmul.mubr.bf16.gmra.mrb[0].mxu0 %v84
  %v129 = vpop.f32.mrb[0].mxu0
  %v130 = vadd.f32 %v36, %v129
  %v131 = vpop.f32.mrb[0].mxu0
  %v132 = vpop.f32.mrb[0].mxu0
  %v133 = vadd.f32 %v36, %v132
  %v134 = vpop.f32.mrb[0].mxu0
  %135 = vmatprep.mubr.bf16.mxu0 0
  %136 = vmatmul.mubr.bf16.gmra.mrb[0].mxu0 %v87
  %v137 = vpop.f32.mrb[0].mxu0
  %v138 = vadd.f32 %v36, %v137
  %v139 = vpop.f32.mrb[0].mxu0
  %v140 = vpop.f32.mrb[0].mxu0
  %v141 = vadd.f32 %v36, %v140
  %v142 = vpop.f32.mrb[0].mxu0
  %143 = vmatprep.mubr.bf16.mxu0 0
  %144 = vmatmul.mubr.bf16.gmra.mrb[0].mxu0 %v90
  %v145 = vpop.f32.mrb[0].mxu0
  %v146 = vadd.f32 %v36, %v145
  %v147 = vpop.f32.mrb[0].mxu0
  %v148 = vpop.f32.mrb[0].mxu0
  %v149 = vadd.f32 %v36, %v148
  %v150 = vpop.f32.mrb[0].mxu0
  %151 = vmatprep.mubr.bf16.mxu0 0
  %152 = vmatmul.mubr.bf16.gmra.mrb[0].mxu0 %v93
  %v153 = vpop.f32.mrb[0].mxu0
  %v154 = vadd.f32 %v36, %v153
  %v155 = vpop.f32.mrb[0].mxu0
  %v156 = vpop.f32.mrb[0].mxu0
  %v157 = vadd.f32 %v36, %v156
  %v158 = vpop.f32.mrb[0].mxu0
  %159 = vdwg.mxu0
  %v160 = vxor.u32 %v130, 2147483648
  %v161 = vxor.u32 %v133, 2147483648
  %v162 = vxor.u32 %v138, 2147483648
  %v163 = vxor.u32 %v141, 2147483648
  %v164 = vxor.u32 %v146, 2147483648
  %v165 = vxor.u32 %v149, 2147483648
  %v166 = vxor.u32 %v154, 2147483648
  %v167 = vxor.u32 %v157, 2147483648
  %v168 = vmul.f32 %v160, 1.442695
  %v169 = vpow.pop %v168
  %v170 = vmul.f32 %v161, 1.442695
  %v171 = vpow.pop %v170
  %v172 = vmul.f32 %v162, 1.442695
  %v173 = vpow.pop %v172
  %v174 = vmul.f32 %v163, 1.442695
  %v175 = vpow.pop %v174
  %v176 = vmul.f32 %v164, 1.442695
  %v177 = vpow.pop %v176
  %v178 = vmul.f32 %v165, 1.442695
  %v179 = vpow.pop %v178
  %v180 = vmul.f32 %v166, 1.442695
  %v181 = vpow.pop %v180
  %v182 = vmul.f32 %v167, 1.442695
  %v183 = vpow.pop %v182
  %v184 = vadd.f32 %v169, 1.0
  %v185 = vadd.f32 %v171, 1.0
  %v186 = vadd.f32 %v173, 1.0
  %v187 = vadd.f32 %v175, 1.0
  %v188 = vadd.f32 %v177, 1.0
  %v189 = vadd.f32 %v179, 1.0
  %v190 = vadd.f32 %v181, 1.0
  %v191 = vadd.f32 %v183, 1.0
  %v192 = vrcp.pop %v184
  %v193 = vmul.f32 1.0, %v192
  %v194 = vrcp.pop %v185
  %v195 = vmul.f32 1.0, %v194
  %v196 = vrcp.pop %v186
  %v197 = vmul.f32 1.0, %v196
  %v198 = vrcp.pop %v187
  %v199 = vmul.f32 1.0, %v198
  %v200 = vrcp.pop %v188
  %v201 = vmul.f32 1.0, %v200
  %v202 = vrcp.pop %v189
  %v203 = vmul.f32 1.0, %v202
  %v204 = vrcp.pop %v190
  %v205 = vmul.f32 1.0, %v204
  %v206 = vrcp.pop %v191
  %v207 = vmul.f32 1.0, %v206
  %208 = vst [vmem:[%s3] sm:$0xff] %v193
  %209 = vst [vmem:[%s3 + $0x8] sm:$0xff] %v195
  %210 = vst [vmem:[%s3 + $0x10] sm:$0xff] %v197
  %211 = vst [vmem:[%s3 + $0x18] sm:$0xff] %v199
  %212 = vst [vmem:[%s3 + $0x20] sm:$0xff] %v201
  %213 = vst [vmem:[%s3 + $0x28] sm:$0xff] %v203
  %214 = vst [vmem:[%s3 + $0x30] sm:$0xff] %v205
  %215 = vst [vmem:[%s3 + $0x38] sm:$0xff] %v207
  // Predicated region
  $region14: #{pubo_forward.3} parent=0 // pred_check
    _
  $region15: #{pubo_forward.3} parent=0 // pred_check_branch
    %217 = sbr.rel (0) target = $region17
  $region16: #{pubo_forward.3} parent=0 // pred_region
    _
  $region17: #{pubo_forward.3} parent=0 // pred_fallthru
    _
  // Predicated region
  $region18: #{pubo_forward.3} parent=0 // pred_check
    _
  $region19: #{pubo_forward.3} parent=0 // pred_check_branch
    %219 = sbr.rel (0) target = $region21
  $region20: #{pubo_forward.3} parent=0 // pred_region
    _
  $region21: #{pubo_forward.3} parent=0 // pred_fallthru
    _

</llo_original>
